<compile_context>
chip_gen: v5e
topology: v5e:2x2
jax: 0.10.0
libtpu: 0.0.40
codegen_flags: <defaults>
</compile_context>

<pallas_src>
import math

import jax
import jax.numpy as jnp
from jax.experimental import pallas as pl
from jax.experimental.pallas import tpu as pltpu


def _round_up(x, m):
    return (x + m - 1) // m * m


def _pad_to(a, rows, cols, dtype=None):
    """Zero-pad a 2-D array to (rows, cols); optional dtype cast (small arrays)."""
    if dtype is not None:
        a = a.astype(dtype)
    pr, pc = rows - a.shape[0], cols - a.shape[1]
    if pr or pc:
        a = jnp.pad(a, ((0, pr), (0, pc)))
    return a


def _gnn_kernel(adj_ref, x_ref, xc_ref, w_msg_ref, w_sc_ref, b_ref, out_ref,
                agg_acc):
    """Grid = (row tiles i, contraction tiles k); k is the reduction axis."""
    k = pl.program_id(1)
    tk = adj_ref.shape[1]                  # static contraction tile width

    @pl.when(k == 0)
    def _init():
        agg_acc[...] = jnp.zeros_like(agg_acc)

    # Adjacency streamed in caller dtype; bf16 cast happens here (VPU, ~free).
    adj_bf16 = adj_ref[...].astype(jnp.bfloat16)

    # X: either fully VMEM-resident (slice the K chunk) or streamed per-k tile.
    if x_ref.shape[0] == tk:
        x_blk = x_ref[...]
    else:
        x_blk = x_ref[pl.ds(pl.multiple_of(k * tk, 128), tk), :]

    # Neighbor aggregation on the MXU: (tm, tk)bf16 @ (tk, Fp)bf16 -> f32 acc.
    agg_acc[...] += jnp.dot(adj_bf16, x_blk,
                            preferred_element_type=jnp.float32)

    @pl.when(k == pl.num_programs(1) - 1)
    def _finalize():
        # Head as two accumulated dots (no staging slab):
        #   agg @ W_msg  +  [x|ctx] @ [W_self; W_ctx]
        h = jnp.dot(agg_acc[...].astype(jnp.bfloat16), w_msg_ref[...],
                    preferred_element_type=jnp.float32)
        h = h + jnp.dot(xc_ref[...], w_sc_ref[...],
                        preferred_element_type=jnp.float32)
        h = h + b_ref[...]                             # f32 bias, row-broadcast
        out_ref[...] = jnp.maximum(h, 0.0).astype(out_ref.dtype)


def gnn_forward(adj, x, ctx, w_msg, w_self, w_ctx, b, *,
                tm=256, tk=512, out_dtype=jnp.float32,
                x_resident_bytes=16 << 20):
    """adj:[N,N]  x:[N,F]  ctx:[N,Hc]  ->  [N,H] in `out_dtype`.

    tm / tk: row / contraction tile sizes (auto-capped for small graphs).
    Tune per generation at scale: tm=512, tk=1024 on v5e/v6e (128 MiB VMEM);
    tm=256-512, tk=512-1024 on v7x (64 MiB VMEM, keep >= 2 row tiles so both
    TensorCores get work).  Pass `out_dtype=jnp.bfloat16` if the consumer
    accepts bf16 to halve output writeback.
    """
    n, f = x.shape
    hc = ctx.shape[1]
    h = w_msg.shape[1]

    fp = _round_up(f, 128)
    hcp = _round_up(hc, 128)
    hp = _round_up(h, 128)

    # Independent row/col tiling; cap tiles for small graphs (>= 2 row tiles
    # keeps both v7x TensorCores busy, and the contraction never pads past one
    # 128-aligned block of N).
    tm_eff = min(tm, max(128, _round_up(-(-n // 2), 128)))
    tk_eff = min(tk, _round_up(n, 128))
    n_pad_r = _round_up(n, tm_eff)       # adjacency rows / xc rows / out rows
    n_pad_c = _round_up(n, tk_eff)       # adjacency cols / x rows

    bf = jnp.bfloat16

    # Adjacency: keep the caller's dtype (f32 or bf16), pad only if needed.
    adj_p = _pad_to(adj, n_pad_r, n_pad_c)

    # Small operands: pad + cast host-side (negligible next to adjacency).
    x_p = _pad_to(x, n_pad_c, fp, bf)                       # K-side X
    xc = jnp.concatenate([_pad_to(x, n_pad_r, fp, bf),      # row-side [x|ctx]
                          _pad_to(ctx, n_pad_r, hcp, bf)], axis=1)

    w1 = _pad_to(w_msg, fp, hp, bf)                          # W_msg
    w2 = jnp.zeros((fp + hcp, hp), bf)                       # [W_self; W_ctx]
    w2 = w2.at[:f, :h].set(w_self.astype(bf))
    w2 = w2.at[fp:fp + hc, :h].set(w_ctx.astype(bf))

    b_p = _pad_to(jnp.asarray(b, jnp.float32).reshape(1, -1), 1, hp)

    # Keep X fully VMEM-resident when it fits comfortably; otherwise stream.
    x_bytes = n_pad_c * fp * 2
    x_resident = x_bytes <= x_resident_bytes
    if x_resident:
        x_spec = pl.BlockSpec((n_pad_c, fp), lambda i, k: (0, 0))
    else:
        x_spec = pl.BlockSpec((tk_eff, fp), lambda i, k: (k, 0))

    grid = (n_pad_r // tm_eff, n_pad_c // tk_eff)

    # VMEM footprint (default double-buffering on every BlockSpec) + scratch,
    # with headroom for compiler-internal scratch.
    def _nbytes(shape, dt):
        return math.prod(shape) * jnp.dtype(dt).itemsize

    vmem_needed = (
        2 * _nbytes((tm_eff, tk_eff), adj_p.dtype)
        + 2 * _nbytes(((n_pad_c if x_resident else tk_eff), fp), bf)
        + 2 * _nbytes((tm_eff, fp + hcp), bf)
        + 2 * _nbytes((fp, hp), bf)
        + 2 * _nbytes((fp + hcp, hp), bf)
        + 2 * _nbytes((8, hp), jnp.float32)
        + 2 * _nbytes((tm_eff, hp), out_dtype)
        + _nbytes((tm_eff, fp), jnp.float32)
    )
    vmem_limit = min(int(vmem_needed) + (16 << 20), 128 << 20)

    # Advisory cost: adjacency streamed once, X once (resident) or per row
    # tile (streamed), xc/weights/bias once, output written once.
    x_reads = 1 if x_resident else (n_pad_r // tm_eff)
    bytes_accessed = (
        adj_p.size * adj_p.dtype.itemsize
        + x_reads * x_p.size * 2
        + xc.size * 2 + w1.size * 2 + w2.size * 2 + b_p.size * 4
        + n_pad_r * hp * jnp.dtype(out_dtype).itemsize
    )
    cost = pl.CostEstimate(
        flops=2 * n_pad_r * n_pad_c * fp + 2 * n_pad_r * (2 * fp + hcp) * hp,
        transcendentals=0,
        bytes_accessed=bytes_accessed,
    )

    out = pl.pallas_call(
        _gnn_kernel,
        out_shape=jax.ShapeDtypeStruct((n_pad_r, hp), out_dtype),
        grid_spec=pltpu.PrefetchScalarGridSpec(
            num_scalar_prefetch=0,
            grid=grid,
            in_specs=[
                pl.BlockSpec((tm_eff, tk_eff), lambda i, k: (i, k)),  # adjacency
                x_spec,                                               # X (K side)
                pl.BlockSpec((tm_eff, fp + hcp), lambda i, k: (i, 0)),  # [x|ctx]
                pl.BlockSpec((fp, hp), lambda i, k: (0, 0)),          # W_msg
                pl.BlockSpec((fp + hcp, hp), lambda i, k: (0, 0)),    # [W_self;W_ctx]
                pl.BlockSpec((1, hp), lambda i, k: (0, 0)),           # bias
            ],
            out_specs=pl.BlockSpec((tm_eff, hp), lambda i, k: (i, 0)),
            scratch_shapes=[
                pltpu.VMEM((tm_eff, fp), jnp.float32),   # aggregation accumulator
            ],
        ),
        compiler_params=pltpu.CompilerParams(
            dimension_semantics=("parallel", "arbitrary"),
            vmem_limit_bytes=vmem_limit),
        cost_estimate=cost,
    )(adj_p, x_p, xc, w1, w2, b_p)

    return out[:n, :h]


def reference_forward(adj, x, ctx, w_msg, w_self, w_ctx, b):
    agg = adj @ x
    return jnp.maximum(agg @ w_msg + x @ w_self + ctx @ w_ctx + b, 0.0)


if __name__ == "__main__":
    key = jax.random.PRNGKey(0)
    N, F, HC, H = 200, 16, 24, 32      # nodes, node feat, lm-context, hidden

    keys = jax.random.split(key, 7)
    # Synthetic "Graphs": random sparse-ish adjacency, row-normalized.
    raw = (jax.random.uniform(keys[0], (N, N)) < 0.25).astype(jnp.float32)
    raw = raw + jnp.eye(N, dtype=jnp.float32)             # self loops
    adj = raw / jnp.sum(raw, axis=-1, keepdims=True)

    x      = jax.random.normal(keys[1], (N, F),  jnp.float32)
    ctx    = jax.random.normal(keys[2], (N, HC), jnp.float32)   # lm_context
    w_msg  = jax.random.normal(keys[3], (F, H),  jnp.float32) * 0.1
    w_self = jax.random.normal(keys[4], (F, H),  jnp.float32) * 0.1
    w_ctx  = jax.random.normal(keys[5], (HC, H), jnp.float32) * 0.1
    b      = jax.random.normal(keys[6], (1, H),  jnp.float32) * 0.1

    out = gnn_forward(adj, x, ctx, w_msg, w_self, w_ctx, b)
    jax.block_until_ready(out)

    ref = reference_forward(adj, x, ctx, w_msg, w_self, w_ctx, b)
    assert out.shape == (N, H) and out.dtype == jnp.float32
    # bf16 MXU feeds (adjacency cast in-kernel) -> slightly looser tolerance
    # vs the f32 reference; accumulation is f32 so error does not compound.
    assert jnp.allclose(out, ref, atol=2e-2, rtol=2e-2), \
        "mismatch vs JAX reference"

    print("KERNEL_OK")
</pallas_src>

<mosaic_0001>
module attributes {stable_mosaic.version = 11 : i64} {
  func.func @_gnn_kernel(%arg0: i32, %arg1: i32, %arg2: memref<128x256xf32, #tpu.memory_space<vmem>>, %arg3: memref<256x128xbf16, #tpu.memory_space<vmem>>, %arg4: memref<128x256xbf16, #tpu.memory_space<vmem>>, %arg5: memref<128x128xbf16, #tpu.memory_space<vmem>>, %arg6: memref<256x128xbf16, #tpu.memory_space<vmem>>, %arg7: memref<1x128xf32, #tpu.memory_space<vmem>>, %arg8: memref<128x128xf32, #tpu.memory_space<vmem>>, %arg9: memref<128x128xf32, #tpu.memory_space<vmem>>) attributes {dimension_semantics = [#tpu.dimension_semantics<parallel>, #tpu.dimension_semantics<arbitrary>], iteration_bounds = array<i64: 2, 1>, scalar_prefetch = 0 : i64, scratch_operands = 1 : i64, tpu.core_type = #tpu.core_type<tc>, window_params = [{transform_indices = @transform_0, window_bounds = array<i64: 128, 256>}, {pipeline_mode = #tpu.pipeline_mode<synchronous>, transform_indices = @transform_1, window_bounds = array<i64: 256, 128>}, {transform_indices = @transform_2, window_bounds = array<i64: 128, 256>}, {pipeline_mode = #tpu.pipeline_mode<synchronous>, transform_indices = @transform_3, window_bounds = array<i64: 128, 128>}, {pipeline_mode = #tpu.pipeline_mode<synchronous>, transform_indices = @transform_4, window_bounds = array<i64: 256, 128>}, {pipeline_mode = #tpu.pipeline_mode<synchronous>, transform_indices = @transform_5, window_bounds = array<i64: 1, 128>}, {transform_indices = @transform_6, window_bounds = array<i64: 128, 128>}]} {
    %c0_i32 = arith.constant 0 : i32
    %0 = arith.cmpi eq, %arg1, %c0_i32 : i32
    %1 = arith.extui %0 : i1 to i32
    %c0_i32_0 = arith.constant 0 : i32
    %2 = arith.cmpi ne, %1, %c0_i32_0 : i32
    scf.if %2 {
      %cst_10 = arith.constant 0.000000e+00 : f32
      %13 = vector.broadcast %cst_10 : f32 to vector<128x128xf32>
      %c0_11 = arith.constant 0 : index
      %c0_12 = arith.constant 0 : index
      %14 = vector.load %arg9[%c0_11, %c0_12] : memref<128x128xf32, #tpu.memory_space<vmem>>, vector<128x128xf32>
      tpu.vector_store %arg9[%c0_11, %c0_12], %13 {strides = array<i32>} : memref<128x128xf32, #tpu.memory_space<vmem>>, vector<128x128xf32>,
    } else {
    }
    %c0 = arith.constant 0 : index
    %c0_1 = arith.constant 0 : index
    %3 = vector.load %arg2[%c0, %c0_1] : memref<128x256xf32, #tpu.memory_space<vmem>>, vector<128x256xf32>
    %4 = arith.truncf %3 : vector<128x256xf32> to vector<128x256xbf16>
    %c0_2 = arith.constant 0 : index
    %c0_3 = arith.constant 0 : index
    %5 = vector.load %arg3[%c0_2, %c0_3] : memref<256x128xbf16, #tpu.memory_space<vmem>>, vector<256x128xbf16>
    %c0_4 = arith.constant 0 : index
    %c0_5 = arith.constant 0 : index
    %6 = vector.load %arg9[%c0_4, %c0_5] : memref<128x128xf32, #tpu.memory_space<vmem>>, vector<128x128xf32>
    %cst = arith.constant dense<0.000000e+00> : vector<128x128xf32>
    %7 = tpu.matmul %4, %5, %cst {dimension_numbers = #tpu.dot_dimension_numbers<[1], [0], [0], [1], [0, 0, 1, 1], [], []>} : vector<128x256xbf16>, vector<256x128xbf16>, vector<128x128xf32> -> vector<128x128xf32>
    %8 = arith.addf %6, %7 : vector<128x128xf32>
    %c0_6 = arith.constant 0 : index
    %c0_7 = arith.constant 0 : index
    %9 = vector.load %arg9[%c0_6, %c0_7] : memref<128x128xf32, #tpu.memory_space<vmem>>, vector<128x128xf32>
    tpu.vector_store %arg9[%c0_6, %c0_7], %8 {strides = array<i32>} : memref<128x128xf32, #tpu.memory_space<vmem>>, vector<128x128xf32>,
    %c0_i32_8 = arith.constant 0 : i32
    %10 = arith.cmpi eq, %arg1, %c0_i32_8 : i32
    %11 = arith.extui %10 : i1 to i32
    %c0_i32_9 = arith.constant 0 : i32
    %12 = arith.cmpi ne, %11, %c0_i32_9 : i32
    scf.if %12 {
      %c0_10 = arith.constant 0 : index
      %c0_11 = arith.constant 0 : index
      %13 = vector.load %arg9[%c0_10, %c0_11] : memref<128x128xf32, #tpu.memory_space<vmem>>, vector<128x128xf32>
      %14 = arith.truncf %13 : vector<128x128xf32> to vector<128x128xbf16>
      %c0_12 = arith.constant 0 : index
      %c0_13 = arith.constant 0 : index
      %15 = vector.load %arg5[%c0_12, %c0_13] : memref<128x128xbf16, #tpu.memory_space<vmem>>, vector<128x128xbf16>
      %cst_14 = arith.constant dense<0.000000e+00> : vector<128x128xf32>
      %16 = tpu.matmul %14, %15, %cst_14 {dimension_numbers = #tpu.dot_dimension_numbers<[1], [0], [0], [1], [0, 0, 1, 1], [], []>} : vector<128x128xbf16>, vector<128x128xbf16>, vector<128x128xf32> -> vector<128x128xf32>
      %c0_15 = arith.constant 0 : index
      %c0_16 = arith.constant 0 : index
      %17 = vector.load %arg4[%c0_15, %c0_16] : memref<128x256xbf16, #tpu.memory_space<vmem>>, vector<128x256xbf16>
      %c0_17 = arith.constant 0 : index
      %c0_18 = arith.constant 0 : index
      %18 = vector.load %arg6[%c0_17, %c0_18] : memref<256x128xbf16, #tpu.memory_space<vmem>>, vector<256x128xbf16>
      %cst_19 = arith.constant dense<0.000000e+00> : vector<128x128xf32>
      %19 = tpu.matmul %17, %18, %cst_19 {dimension_numbers = #tpu.dot_dimension_numbers<[1], [0], [0], [1], [0, 0, 1, 1], [], []>} : vector<128x256xbf16>, vector<256x128xbf16>, vector<128x128xf32> -> vector<128x128xf32>
      %20 = arith.addf %16, %19 : vector<128x128xf32>
      %c0_20 = arith.constant 0 : index
      %c0_21 = arith.constant 0 : index
      %21 = vector.load %arg7[%c0_20, %c0_21] : memref<1x128xf32, #tpu.memory_space<vmem>>, vector<1x128xf32>
      %22 = vector.broadcast %21 : vector<1x128xf32> to vector<128x128xf32>
      %23 = arith.addf %20, %22 : vector<128x128xf32>
      %cst_22 = arith.constant 0.000000e+00 : f32
      %24 = vector.broadcast %cst_22 : f32 to vector<128x128xf32>
      %25 = arith.maximumf %23, %24 : vector<128x128xf32>
      %c0_23 = arith.constant 0 : index
      %c0_24 = arith.constant 0 : index
      %26 = vector.load %arg8[%c0_23, %c0_24] : memref<128x128xf32, #tpu.memory_space<vmem>>, vector<128x128xf32>
      tpu.vector_store %arg8[%c0_23, %c0_24], %25 {strides = array<i32>} : memref<128x128xf32, #tpu.memory_space<vmem>>, vector<128x128xf32>,
    } else {
    }
    return
  }
  func.func @transform_0(%arg0: i32, %arg1: i32) -> (i32, i32) {
    %c0_i32 = arith.constant 0 : i32
    return %arg0, %arg1 : i32, i32
  }
  func.func @transform_1(%arg0: i32, %arg1: i32) -> (i32, i32) {
    %c0_i32 = arith.constant 0 : i32
    %c0_i32_0 = arith.constant 0 : i32
    %c0_i32_1 = arith.constant 0 : i32
    return %c0_i32, %c0_i32_0 : i32, i32
  }
  func.func @transform_2(%arg0: i32, %arg1: i32) -> (i32, i32) {
    %c0_i32 = arith.constant 0 : i32
    %c0_i32_0 = arith.constant 0 : i32
    return %arg0, %c0_i32 : i32, i32
  }
  func.func @transform_3(%arg0: i32, %arg1: i32) -> (i32, i32) {
    %c0_i32 = arith.constant 0 : i32
    %c0_i32_0 = arith.constant 0 : i32
    %c0_i32_1 = arith.constant 0 : i32
    return %c0_i32, %c0_i32_0 : i32, i32
  }
  func.func @transform_4(%arg0: i32, %arg1: i32) -> (i32, i32) {
    %c0_i32 = arith.constant 0 : i32
    %c0_i32_0 = arith.constant 0 : i32
    %c0_i32_1 = arith.constant 0 : i32
    return %c0_i32, %c0_i32_0 : i32, i32
  }
  func.func @transform_5(%arg0: i32, %arg1: i32) -> (i32, i32) {
    %c0_i32 = arith.constant 0 : i32
    %c0_i32_0 = arith.constant 0 : i32
    %c0_i32_1 = arith.constant 0 : i32
    return %c0_i32, %c0_i32_0 : i32, i32
  }
  func.func @transform_6(%arg0: i32, %arg1: i32) -> (i32, i32) {
    %c0_i32 = arith.constant 0 : i32
    %c0_i32_0 = arith.constant 0 : i32
    return %arg0, %c0_i32 : i32, i32
  }
}

</mosaic_0001>

<llo_original>
// kernel: tpu_custom_call.1
$region0: #{tpu_custom_call.1}
  #allocation0 [shape = 'u32[]', space=smem, size = 0x4, offset = 0x4, fixed_abs, tag = 'smem constant byte address 0x4 - core index']
  #allocation1 [shape = 'u32[72,128]{1,0:T(1,128)}', space=vmem, size = 0x9000, scoped, tag = 'internal scratch']
  #allocation2 [shape = 'f32[128,128]{1,0:T(8,128)}', space=vmem, size = 0x10000, scoped, tag = 'scratch operand']
  %s0 = inlined_call_operand.hbm [shape: f32[256,256], index: 0, kind: input, shape index: {}]
  %s1 = inlined_call_operand.hbm [shape: bf16[256,128], index: 1, kind: input, shape index: {}]
  %s2 = inlined_call_operand.hbm [shape: bf16[256,256], index: 2, kind: input, shape index: {}]
  %s3 = inlined_call_operand.hbm [shape: bf16[128,128], index: 3, kind: input, shape index: {}]
  %s4 = inlined_call_operand.hbm [shape: bf16[256,128], index: 4, kind: input, shape index: {}]
  %s5 = inlined_call_operand.vmem [shape: f32[1,128], index: 5, kind: input, shape index: {}]
  %s6 = inlined_call_operand.hbm [shape: f32[256,128], index: 6, kind: output, shape index: {}]
  %s7 = sld [smem:[#allocation0]]
  $region85: #{tpu_custom_call.1} parent=0
    _
  %s9 = ssub.s32 1, %s7
  %s10 = scalar_select 0, %s9, %s7
  $region1: #{tpu_custom_call.1} parent=0
    #allocation3 [shape = 'u8[262144]{0}', space=vmem, size = 0x40000, scoped, tag = 'input window, operand 0']
    #allocation4 [shape = 's32[2]{0}', space=sflag, size = 0x8, scoped, tag = 'scoped memory for tpu_custom_call.1']
    #allocation5 [shape = 's32[2]{0}', space=sflag, size = 0x8, scoped, tag = 'scoped memory for tpu_custom_call.1']
    #allocation6 [shape = 'u8[65536]{0}', space=vmem, size = 0x10000, scoped, tag = 'input window, operand 1, single buffered']
    #allocation7 [shape = 's32[1]{0}', space=sflag, size = 0x4, scoped, tag = 'scoped memory for tpu_custom_call.1']
    #allocation8 [shape = 'u8[131072]{0}', space=vmem, size = 0x20000, scoped, tag = 'input window, operand 2']
    #allocation9 [shape = 'u8[32768]{0}', space=vmem, size = 0x8000, scoped, tag = 'input window, operand 3, single buffered']
    #allocation10 [shape = 'u8[65536]{0}', space=vmem, size = 0x10000, scoped, tag = 'input window, operand 4, single buffered']
    #allocation11 [shape = 's32[1]{0}', space=sflag, size = 0x4, scoped, tag = 'scoped memory for tpu_custom_call.1']
    #allocation12 [shape = 'u8[131072]{0}', space=vmem, size = 0x20000, scoped, tag = 'output window, operand 0']
    %11 = vsyncpa [#allocation4], 0
    %s12 = scalar_lea.sflag [#allocation4], 1
    %13 = vsyncpa %s12, 0
    %14 = vsyncpa [#allocation7], 0
    %15 = vsyncpa [#allocation11], 0
    %16 = vsyncpa [#allocation5], 0
    %s17 = scalar_lea.sflag [#allocation5], 1
    %18 = vsyncpa %s17, 0
    loop: start=0, step=1, limit=4
    $region2: #{tpu_custom_call.1} parent=1 // loop_pre_header
      _
    $region3: #{tpu_custom_call.1} parent=1 // loop_header
      %s20 = sphi 0, %s24
      %p21 = scmp.ge.s32.totalorder %s20, 4
      %s27 = sphi 0, %s39
      %s28 = sphi 0, %s35
      %s29 = sphi 0, %s27
      %s30 = sphi 0, %s28
      %s31 = sphi 0, %s29
      %s32 = sphi 0, %s30
      %s44 = sphi 0, %s46
      %s47 = sphi 0, %s44
      %s48 = sphi 0, %s47
      %s64 = sphi 0, %s48
      %s68 = sphi 0, %s68
      %s70 = sphi 0, %s68
      %s71 = sphi 0, %s70
      %s85 = sphi 0, %s71
      %s91 = sphi 0, %s93
      %s94 = sphi 0, %s91
      %s95 = sphi 0, %s94
      %s111 = sphi 0, %s95
      %s115 = sphi 0, %s115
      %s117 = sphi 0, %s115
      %s118 = sphi 0, %s117
      %s132 = sphi 0, %s118
      %s136 = sphi 0, %s136
      %s138 = sphi 0, %s136
      %s139 = sphi 0, %s138
      %s153 = sphi 0, %s139
      %s157 = sphi 0, %s157
      %s159 = sphi 0, %s157
      %s160 = sphi 0, %s159
      %s174 = sphi 0, %s160
      %s180 = sphi 0, %s182
      %s183 = sphi 0, %s180
      %s184 = sphi 0, %s183
      %s200 = sphi 0, %s184
    $region4: #{tpu_custom_call.1} parent=1 // loop_header_branch
      %23 = sbr.rel (%p21) target = $region8
    $region5: #{tpu_custom_call.1} parent=1 // loop_body
      %s25 = ssub.s32 %s20, 1
      %s26 = ssub.s32 %s20, 2
      %s33 = sadd.s32 1, %s28
      %p34 = scmp.ge.s32.totalorder %s33, 1
      %s35 = scalar_select %p34, 0, %s33
      %s36 = sadd.s32 1, %s27
      %s37 = scalar_select %p34, %s36, %s27
      %p38 = scmp.ge.s32.totalorder %s37, 2
      %s39 = scalar_select %p38, 0, %s37
      %s40 = ssub.s32 %s27, %s39
      %s41 = ssub.s32 %s28, %s35
      %s42 = sor.u32 %s40, %s41
      %p43 = scmp.eq.s32.totalorder %s42, 0
      %s45 = sadd.s32 %s44, 1
      %s46 = scalar_select %p43, %s44, %s45
      %p49 = pneg %p43
      %p50 = scmp.eq.s32.totalorder %s20, 1
      %p51 = por %p49, %p50
      %p52 = scmp.ne.s32.totalorder %s44, %s47
      %p53 = scmp.eq.s32.totalorder %s20, 0
      %p54 = por %p52, %p53
      %p55 = scmp.ne.s32.totalorder %s44, %s47
      %p56 = scmp.eq.s32.totalorder %s25, 1
      %p57 = por %p55, %p56
      %p58 = scmp.ne.s32.totalorder %s47, %s48
      %p59 = scmp.eq.s32.totalorder %s25, 0
      %p60 = por %p58, %p59
      %p61 = scmp.ne.s32.totalorder %s47, %s48
      %p62 = scmp.eq.s32.totalorder %s26, 1
      %p63 = por %p61, %p62
      %p65 = scmp.ne.s32.totalorder %s48, %s64
      %p66 = scmp.eq.s32.totalorder %s26, 0
      %p67 = por %p65, %p66
      %s69 = sadd.s32 %s68, 1
      %p72 = scmp.eq.s32.totalorder %s20, 1
      %p73 = scmp.ne.s32.totalorder %s68, %s70
      %p74 = scmp.eq.s32.totalorder %s20, 0
      %p75 = por %p73, %p74
      %p76 = scmp.ne.s32.totalorder %s68, %s70
      %p77 = scmp.eq.s32.totalorder %s25, 1
      %p78 = por %p76, %p77
      %p79 = scmp.ne.s32.totalorder %s70, %s71
      %p80 = scmp.eq.s32.totalorder %s25, 0
      %p81 = por %p79, %p80
      %p82 = scmp.ne.s32.totalorder %s70, %s71
      %p83 = scmp.eq.s32.totalorder %s26, 1
      %p84 = por %p82, %p83
      %p86 = scmp.ne.s32.totalorder %s71, %s85
      %p87 = scmp.eq.s32.totalorder %s26, 0
      %p88 = por %p86, %p87
      %s89 = ssub.s32 %s27, %s39
      %p90 = scmp.eq.s32.totalorder %s89, 0
      %s92 = sadd.s32 %s91, 1
      %s93 = scalar_select %p90, %s91, %s92
      %p96 = pneg %p90
      %p97 = scmp.eq.s32.totalorder %s20, 1
      %p98 = por %p96, %p97
      %p99 = scmp.ne.s32.totalorder %s91, %s94
      %p100 = scmp.eq.s32.totalorder %s20, 0
      %p101 = por %p99, %p100
      %p102 = scmp.ne.s32.totalorder %s91, %s94
      %p103 = scmp.eq.s32.totalorder %s25, 1
      %p104 = por %p102, %p103
      %p105 = scmp.ne.s32.totalorder %s94, %s95
      %p106 = scmp.eq.s32.totalorder %s25, 0
      %p107 = por %p105, %p106
      %p108 = scmp.ne.s32.totalorder %s94, %s95
      %p109 = scmp.eq.s32.totalorder %s26, 1
      %p110 = por %p108, %p109
      %p112 = scmp.ne.s32.totalorder %s95, %s111
      %p113 = scmp.eq.s32.totalorder %s26, 0
      %p114 = por %p112, %p113
      %s116 = sadd.s32 %s115, 1
      %p119 = scmp.eq.s32.totalorder %s20, 1
      %p120 = scmp.ne.s32.totalorder %s115, %s117
      %p121 = scmp.eq.s32.totalorder %s20, 0
      %p122 = por %p120, %p121
      %p123 = scmp.ne.s32.totalorder %s115, %s117
      %p124 = scmp.eq.s32.totalorder %s25, 1
      %p125 = por %p123, %p124
      %p126 = scmp.ne.s32.totalorder %s117, %s118
      %p127 = scmp.eq.s32.totalorder %s25, 0
      %p128 = por %p126, %p127
      %p129 = scmp.ne.s32.totalorder %s117, %s118
      %p130 = scmp.eq.s32.totalorder %s26, 1
      %p131 = por %p129, %p130
      %p133 = scmp.ne.s32.totalorder %s118, %s132
      %p134 = scmp.eq.s32.totalorder %s26, 0
      %p135 = por %p133, %p134
      %s137 = sadd.s32 %s136, 1
      %p140 = scmp.eq.s32.totalorder %s20, 1
      %p141 = scmp.ne.s32.totalorder %s136, %s138
      %p142 = scmp.eq.s32.totalorder %s20, 0
      %p143 = por %p141, %p142
      %p144 = scmp.ne.s32.totalorder %s136, %s138
      %p145 = scmp.eq.s32.totalorder %s25, 1
      %p146 = por %p144, %p145
      %p147 = scmp.ne.s32.totalorder %s138, %s139
      %p148 = scmp.eq.s32.totalorder %s25, 0
      %p149 = por %p147, %p148
      %p150 = scmp.ne.s32.totalorder %s138, %s139
      %p151 = scmp.eq.s32.totalorder %s26, 1
      %p152 = por %p150, %p151
      %p154 = scmp.ne.s32.totalorder %s139, %s153
      %p155 = scmp.eq.s32.totalorder %s26, 0
      %p156 = por %p154, %p155
      %s158 = sadd.s32 %s157, 1
      %p161 = scmp.eq.s32.totalorder %s20, 1
      %p162 = scmp.ne.s32.totalorder %s157, %s159
      %p163 = scmp.eq.s32.totalorder %s20, 0
      %p164 = por %p162, %p163
      %p165 = scmp.ne.s32.totalorder %s157, %s159
      %p166 = scmp.eq.s32.totalorder %s25, 1
      %p167 = por %p165, %p166
      %p168 = scmp.ne.s32.totalorder %s159, %s160
      %p169 = scmp.eq.s32.totalorder %s25, 0
      %p170 = por %p168, %p169
      %p171 = scmp.ne.s32.totalorder %s159, %s160
      %p172 = scmp.eq.s32.totalorder %s26, 1
      %p173 = por %p171, %p172
      %p175 = scmp.ne.s32.totalorder %s160, %s174
      %p176 = scmp.eq.s32.totalorder %s26, 0
      %p177 = por %p175, %p176
      %s178 = ssub.s32 %s27, %s39
      %p179 = scmp.eq.s32.totalorder %s178, 0
      %s181 = sadd.s32 %s180, 1
      %s182 = scalar_select %p179, %s180, %s181
      %p185 = pneg %p179
      %p186 = scmp.eq.s32.totalorder %s20, 1
      %p187 = por %p185, %p186
      %p188 = scmp.ne.s32.totalorder %s180, %s183
      %p189 = scmp.eq.s32.totalorder %s20, 0
      %p190 = por %p188, %p189
      %p191 = scmp.ne.s32.totalorder %s180, %s183
      %p192 = scmp.eq.s32.totalorder %s25, 1
      %p193 = por %p191, %p192
      %p194 = scmp.ne.s32.totalorder %s183, %s184
      %p195 = scmp.eq.s32.totalorder %s25, 0
      %p196 = por %p194, %p195
      %p197 = scmp.ne.s32.totalorder %s183, %s184
      %p198 = scmp.eq.s32.totalorder %s26, 1
      %p199 = por %p197, %p198
      %p201 = scmp.ne.s32.totalorder %s184, %s200
      %p202 = scmp.eq.s32.totalorder %s26, 0
      %p203 = por %p201, %p202
      %p204 = scmp.le.s32.totalorder 1, %s20
      %p205 = scmp.lt.s32.totalorder %s20, 3
      %p206 = pnand %p204, %p205
      %p207 = pneg %p206
      // Predicated region
      $region9: #{tpu_custom_call.1} parent=5 // pred_check
        _
      $region10: #{tpu_custom_call.1} parent=5 // pred_check_branch
        %209 = sbr.rel (%p206) target = $region12
      $region11: #{tpu_custom_call.1} parent=5 // pred_region
        %s210 = ssub.s32 %s20, 1
        // Predicated region
        $region13: #{tpu_custom_call.1} parent=11 // pred_check
          %p211 = pneg %p81
        $region14: #{tpu_custom_call.1} parent=11 // pred_check_branch
          %213 = sbr.rel (%p211) target = $region16
        $region15: #{tpu_custom_call.1} parent=11 // pred_region
          %215 = vsyncadd [#allocation7], 0
          %s216 = sshll.u32 %s1, 4
          %s217 = int_to_ptr.hbm [resolvable:$true] %s216
          %s218 = sshll.u32 [#allocation6], 4
          %s219 = int_to_ptr.vmem [resolvable:$true] %s218
          %224 = dma.hbm_to_vmem [thread:$0]  %s217, 2048, %s219, [#allocation7], 64, 64, 4
        $region16: #{tpu_custom_call.1} parent=11 // pred_fallthru
          _
        // Predicated region
        $region17: #{tpu_custom_call.1} parent=11 // pred_check
          %p225 = pneg %p128
        $region18: #{tpu_custom_call.1} parent=11 // pred_check_branch
          %227 = sbr.rel (%p225) target = $region20
        $region19: #{tpu_custom_call.1} parent=11 // pred_region
          %229 = vsyncadd [#allocation7], 0
          %s230 = sshll.u32 %s3, 4
          %s231 = int_to_ptr.hbm [resolvable:$true] %s230
          %s232 = sshll.u32 [#allocation9], 4
          %s233 = int_to_ptr.vmem [resolvable:$true] %s232
          %238 = dma.hbm_to_vmem [thread:$0]  %s231, 1024, %s233, [#allocation7], 64, 64, 4
        $region20: #{tpu_custom_call.1} parent=11 // pred_fallthru
          _
        // Predicated region
        $region21: #{tpu_custom_call.1} parent=11 // pred_check
          %p239 = pneg %p149
        $region22: #{tpu_custom_call.1} parent=11 // pred_check_branch
          %241 = sbr.rel (%p239) target = $region24
        $region23: #{tpu_custom_call.1} parent=11 // pred_region
          %243 = vsyncadd [#allocation11], 0
          %s244 = sshll.u32 %s4, 4
          %s245 = int_to_ptr.hbm [resolvable:$true] %s244
          %s246 = sshll.u32 [#allocation10], 4
          %s247 = int_to_ptr.vmem [resolvable:$true] %s246
          %252 = dma.hbm_to_vmem [thread:$0]  %s245, 2048, %s247, [#allocation11], 64, 64, 4
        $region24: #{tpu_custom_call.1} parent=11 // pred_fallthru
          _
        // Predicated region
        $region25: #{tpu_custom_call.1} parent=11 // pred_check
          %p253 = pneg %p170
        $region26: #{tpu_custom_call.1} parent=11 // pred_check_branch
          %255 = sbr.rel (%p253) target = $region28
        $region27: #{tpu_custom_call.1} parent=11 // pred_region
          _
        $region28: #{tpu_custom_call.1} parent=11 // pred_fallthru
          _
      $region12: #{tpu_custom_call.1} parent=5 // pred_fallthru
        _
      %p256 = scmp.lt.s32.totalorder %s20, 2
      // Predicated region
      $region29: #{tpu_custom_call.1} parent=5 // pred_check
        %p257 = pneg %p256
      $region30: #{tpu_custom_call.1} parent=5 // pred_check_branch
        %259 = sbr.rel (%p257) target = $region32
      $region31: #{tpu_custom_call.1} parent=5 // pred_region
        // Predicated region
        $region33: #{tpu_custom_call.1} parent=31 // pred_check
          %p260 = pneg %p54
        $region34: #{tpu_custom_call.1} parent=31 // pred_check_branch
          %262 = sbr.rel (%p260) target = $region36
        $region35: #{tpu_custom_call.1} parent=31 // pred_region
          %s263 = sand.u32 %s20, 1
          %s264 = scalar_lea.sflag [#allocation4], %s263
          %s265 = sand.u32 %s44, 1
          %s266 = smul.addr %s265, 256
          %s267 = scalar_lea.vmem [#allocation3], %s266
          %s268 = smul.u32 16, %s27
          %s269 = smul.u32 2, %s28
          %271 = vsyncadd %s264, 0
          %s272 = smul.addr %s268, 2
          %s273 = sadd.s32 %s269, %s272
          %s274 = smul.addr %s273, 8
          %s275 = scalar_lea.hbm %s0, %s274
          %s276 = sshll.u32 %s275, 4
          %s277 = int_to_ptr.hbm [resolvable:$true] %s276
          %s278 = sshll.u32 %s267, 4
          %s279 = int_to_ptr.vmem [resolvable:$true] %s278
          %284 = dma.hbm_to_vmem [thread:$0]  %s277, 4096, %s279, %s264, 256, 256, 16
        $region36: #{tpu_custom_call.1} parent=31 // pred_fallthru
          _
        // Predicated region
        $region37: #{tpu_custom_call.1} parent=31 // pred_check
          %p285 = pneg %p101
        $region38: #{tpu_custom_call.1} parent=31 // pred_check_branch
          %287 = sbr.rel (%p285) target = $region40
        $region39: #{tpu_custom_call.1} parent=31 // pred_region
          %s288 = sand.u32 %s20, 1
          %s289 = scalar_lea.sflag [#allocation4], %s288
          %s290 = sand.u32 %s91, 1
          %s291 = smul.addr %s290, 128
          %s292 = scalar_lea.vmem [#allocation8], %s291
          %s293 = smul.u32 16, %s27
          %295 = vsyncadd %s289, 0
          %s296 = smul.addr %s293, 2
          %s297 = smul.addr %s296, 4
          %s298 = scalar_lea.hbm %s2, %s297
          %s299 = sshll.u32 %s298, 4
          %s300 = int_to_ptr.hbm [resolvable:$true] %s299
          %s301 = sshll.u32 %s292, 4
          %s302 = int_to_ptr.vmem [resolvable:$true] %s301
          %307 = dma.hbm_to_vmem [thread:$0]  %s300, 2048, %s302, %s289, 128, 128, 8
        $region40: #{tpu_custom_call.1} parent=31 // pred_fallthru
          _
      $region32: #{tpu_custom_call.1} parent=5 // pred_fallthru
        _
      %p308 = scmp.le.s32.totalorder 1, %s20
      %p309 = scmp.lt.s32.totalorder %s20, 3
      %p310 = pnand %p308, %p309
      %p311 = pneg %p310
      // Predicated region
      $region41: #{tpu_custom_call.1} parent=5 // pred_check
        _
      $region42: #{tpu_custom_call.1} parent=5 // pred_check_branch
        %313 = sbr.rel (%p310) target = $region44
      $region43: #{tpu_custom_call.1} parent=5 // pred_region
        %s314 = ssub.s32 %s20, 1
        %s315 = sand.u32 %s25, 1
        %s316 = scalar_lea.sflag [#allocation4], %s315
        %s317 = sand.u32 %s47, 1
        %s318 = smul.addr %s317, 256
        %s319 = scalar_lea.vmem [#allocation3], %s318
        // Predicated region
        $region45: #{tpu_custom_call.1} parent=43 // pred_check
          %p320 = pneg %p60
        $region46: #{tpu_custom_call.1} parent=43 // pred_check_branch
          %322 = sbr.rel (%p320) target = $region48
        $region47: #{tpu_custom_call.1} parent=43 // pred_region
          %324 = dma.done %s316, 4096
        $region48: #{tpu_custom_call.1} parent=43 // pred_fallthru
          _
        // Predicated region
        $region49: #{tpu_custom_call.1} parent=43 // pred_check
          %p325 = pneg %p81
        $region50: #{tpu_custom_call.1} parent=43 // pred_check_branch
          %327 = sbr.rel (%p325) target = $region52
        $region51: #{tpu_custom_call.1} parent=43 // pred_region
          %329 = dma.done [#allocation7], 2048
        $region52: #{tpu_custom_call.1} parent=43 // pred_fallthru
          _
        %s330 = sand.u32 %s25, 1
        %s331 = scalar_lea.sflag [#allocation4], %s330
        %s332 = sand.u32 %s94, 1
        %s333 = smul.addr %s332, 128
        %s334 = scalar_lea.vmem [#allocation8], %s333
        // Predicated region
        $region53: #{tpu_custom_call.1} parent=43 // pred_check
          %p335 = pneg %p107
        $region54: #{tpu_custom_call.1} parent=43 // pred_check_branch
          %337 = sbr.rel (%p335) target = $region56
        $region55: #{tpu_custom_call.1} parent=43 // pred_region
          %339 = dma.done %s331, 2048
        $region56: #{tpu_custom_call.1} parent=43 // pred_fallthru
          _
        // Predicated region
        $region57: #{tpu_custom_call.1} parent=43 // pred_check
          %p340 = pneg %p128
        $region58: #{tpu_custom_call.1} parent=43 // pred_check_branch
          %342 = sbr.rel (%p340) target = $region60
        $region59: #{tpu_custom_call.1} parent=43 // pred_region
          %344 = dma.done [#allocation7], 1024
        $region60: #{tpu_custom_call.1} parent=43 // pred_fallthru
          _
        // Predicated region
        $region61: #{tpu_custom_call.1} parent=43 // pred_check
          %p345 = pneg %p149
        $region62: #{tpu_custom_call.1} parent=43 // pred_check_branch
          %347 = sbr.rel (%p345) target = $region64
        $region63: #{tpu_custom_call.1} parent=43 // pred_region
          %349 = dma.done [#allocation11], 2048
        $region64: #{tpu_custom_call.1} parent=43 // pred_fallthru
          _
        %s350 = sand.u32 %s25, 1
        %s351 = scalar_lea.sflag [#allocation4], %s350
        %s352 = sand.u32 %s47, 1
        %s353 = smul.addr %s352, 256
        %s354 = scalar_lea.vmem [#allocation3], %s353
        %p355 = pneg %p60
        %p356 = pneg %p57
        %p357 = pneg %p81
        %p358 = pneg %p78
        %s359 = sand.u32 %s25, 1
        %s360 = scalar_lea.sflag [#allocation4], %s359
        %s361 = sand.u32 %s94, 1
        %s362 = smul.addr %s361, 128
        %s363 = scalar_lea.vmem [#allocation8], %s362
        %p364 = pneg %p107
        %p365 = pneg %p104
        %p366 = pneg %p128
        %p367 = pneg %p125
        %p368 = pneg %p149
        %p369 = pneg %p146
        %p370 = pneg %p170
        %p371 = pneg %p167
        %p372 = pneg %p196
        %p373 = pneg %p193
        %s374 = sand.u32 %s183, 1
        %s375 = scalar_lea.sflag [#allocation5], %s374
        %s376 = sand.u32 %s183, 1
        %s377 = smul.addr %s376, 128
        %s378 = scalar_lea.vmem [#allocation12], %s377
        %s379 = smul.u32 16, %s29
        %s380 = smul.u32 2, %s30
        %s381 = smul.u32 16, %s29
        %s382 = smul.u32 16, %s29
        %p383 = scmp.eq.s32.totalorder %s30, 0
        // Predicated region
        $region65: #{tpu_custom_call.1} parent=43 // pred_check
          %p384 = pneg %p383
        $region66: #{tpu_custom_call.1} parent=43 // pred_check_branch
          %386 = sbr.rel (%p384) target = $region68
        $region67: #{tpu_custom_call.1} parent=43 // pred_region
          %387 = vst [vmem:[#allocation2] sm:$0xff] 0.0
          %388 = vst [vmem:[#allocation2 + $0x8] sm:$0xff] 0.0
          %389 = vst [vmem:[#allocation2 + $0x10] sm:$0xff] 0.0
          %390 = vst [vmem:[#allocation2 + $0x18] sm:$0xff] 0.0
          %391 = vst [vmem:[#allocation2 + $0x20] sm:$0xff] 0.0
          %392 = vst [vmem:[#allocation2 + $0x28] sm:$0xff] 0.0
          %393 = vst [vmem:[#allocation2 + $0x30] sm:$0xff] 0.0
          %394 = vst [vmem:[#allocation2 + $0x38] sm:$0xff] 0.0
          %395 = vst [vmem:[#allocation2 + $0x40] sm:$0xff] 0.0
          %396 = vst [vmem:[#allocation2 + $0x48] sm:$0xff] 0.0
          %397 = vst [vmem:[#allocation2 + $0x50] sm:$0xff] 0.0
          %398 = vst [vmem:[#allocation2 + $0x58] sm:$0xff] 0.0
          %399 = vst [vmem:[#allocation2 + $0x60] sm:$0xff] 0.0
          %400 = vst [vmem:[#allocation2 + $0x68] sm:$0xff] 0.0
          %401 = vst [vmem:[#allocation2 + $0x70] sm:$0xff] 0.0
          %402 = vst [vmem:[#allocation2 + $0x78] sm:$0xff] 0.0
        $region68: #{tpu_custom_call.1} parent=43 // pred_fallthru
          _
        %v403 = vld [vmem:[%s319] sm:$0xff]
        %v404 = vld [vmem:[%s319 + $0x8] sm:$0xff]
        %v405 = vld [vmem:[%s319 + $0x10] sm:$0xff]
        %v406 = vld [vmem:[%s319 + $0x18] sm:$0xff]
        %v407 = vld [vmem:[%s319 + $0x20] sm:$0xff]
        %v408 = vld [vmem:[%s319 + $0x28] sm:$0xff]
        %v409 = vld [vmem:[%s319 + $0x30] sm:$0xff]
        %v410 = vld [vmem:[%s319 + $0x38] sm:$0xff]
        %v411 = vld [vmem:[%s319 + $0x40] sm:$0xff]
        %v412 = vld [vmem:[%s319 + $0x48] sm:$0xff]
        %v413 = vld [vmem:[%s319 + $0x50] sm:$0xff]
        %v414 = vld [vmem:[%s319 + $0x58] sm:$0xff]
        %v415 = vld [vmem:[%s319 + $0x60] sm:$0xff]
        %v416 = vld [vmem:[%s319 + $0x68] sm:$0xff]
        %v417 = vld [vmem:[%s319 + $0x70] sm:$0xff]
        %v418 = vld [vmem:[%s319 + $0x78] sm:$0xff]
        %v419 = vld [vmem:[%s319 + $0x80] sm:$0xff]
        %v420 = vld [vmem:[%s319 + $0x88] sm:$0xff]
        %v421 = vld [vmem:[%s319 + $0x90] sm:$0xff]
        %v422 = vld [vmem:[%s319 + $0x98] sm:$0xff]
        %v423 = vld [vmem:[%s319 + $0xa0] sm:$0xff]
        %v424 = vld [vmem:[%s319 + $0xa8] sm:$0xff]
        %v425 = vld [vmem:[%s319 + $0xb0] sm:$0xff]
        %v426 = vld [vmem:[%s319 + $0xb8] sm:$0xff]
        %v427 = vld [vmem:[%s319 + $0xc0] sm:$0xff]
        %v428 = vld [vmem:[%s319 + $0xc8] sm:$0xff]
        %v429 = vld [vmem:[%s319 + $0xd0] sm:$0xff]
        %v430 = vld [vmem:[%s319 + $0xd8] sm:$0xff]
        %v431 = vld [vmem:[%s319 + $0xe0] sm:$0xff]
        %v432 = vld [vmem:[%s319 + $0xe8] sm:$0xff]
        %v433 = vld [vmem:[%s319 + $0xf0] sm:$0xff]
        %v434 = vld [vmem:[%s319 + $0xf8] sm:$0xff]
        %v435 = vpack.c.bf16 %v405, %v403
        %v436 = vpack.c.bf16 %v406, %v404
        %v437 = vpack.c.bf16 %v409, %v407
        %v438 = vpack.c.bf16 %v410, %v408
        %v439 = vpack.c.bf16 %v413, %v411
        %v440 = vpack.c.bf16 %v414, %v412
        %v441 = vpack.c.bf16 %v417, %v415
        %v442 = vpack.c.bf16 %v418, %v416
        %v443 = vpack.c.bf16 %v421, %v419
        %v444 = vpack.c.bf16 %v422, %v420
        %v445 = vpack.c.bf16 %v425, %v423
        %v446 = vpack.c.bf16 %v426, %v424
        %v447 = vpack.c.bf16 %v429, %v427
        %v448 = vpack.c.bf16 %v430, %v428
        %v449 = vpack.c.bf16 %v433, %v431
        %v450 = vpack.c.bf16 %v434, %v432
        %v451 = vld [vmem:[#allocation6] sm:$0xf]
        %v452 = vld [vmem:[#allocation6 + $0x4] sm:$0xf]
        %v453 = vld [vmem:[#allocation6 + $0x8] sm:$0xf]
        %v454 = vld [vmem:[#allocation6 + $0xc] sm:$0xf]
        %v455 = vld [vmem:[#allocation6 + $0x10] sm:$0xf]
        %v456 = vld [vmem:[#allocation6 + $0x14] sm:$0xf]
        %v457 = vld [vmem:[#allocation6 + $0x18] sm:$0xf]
        %v458 = vld [vmem:[#allocation6 + $0x1c] sm:$0xf]
        %v459 = vld [vmem:[#allocation6 + $0x20] sm:$0xf]
        %v460 = vld [vmem:[#allocation6 + $0x24] sm:$0xf]
        %v461 = vld [vmem:[#allocation6 + $0x28] sm:$0xf]
        %v462 = vld [vmem:[#allocation6 + $0x2c] sm:$0xf]
        %v463 = vld [vmem:[#allocation6 + $0x30] sm:$0xf]
        %v464 = vld [vmem:[#allocation6 + $0x34] sm:$0xf]
        %v465 = vld [vmem:[#allocation6 + $0x38] sm:$0xf]
        %v466 = vld [vmem:[#allocation6 + $0x3c] sm:$0xf]
        %v467 = vld [vmem:[#allocation6 + $0x40] sm:$0xf]
        %v468 = vld [vmem:[#allocation6 + $0x44] sm:$0xf]
        %v469 = vld [vmem:[#allocation6 + $0x48] sm:$0xf]
        %v470 = vld [vmem:[#allocation6 + $0x4c] sm:$0xf]
        %v471 = vld [vmem:[#allocation6 + $0x50] sm:$0xf]
        %v472 = vld [vmem:[#allocation6 + $0x54] sm:$0xf]
        %v473 = vld [vmem:[#allocation6 + $0x58] sm:$0xf]
        %v474 = vld [vmem:[#allocation6 + $0x5c] sm:$0xf]
        %v475 = vld [vmem:[#allocation6 + $0x60] sm:$0xf]
        %v476 = vld [vmem:[#allocation6 + $0x64] sm:$0xf]
        %v477 = vld [vmem:[#allocation6 + $0x68] sm:$0xf]
        %v478 = vld [vmem:[#allocation6 + $0x6c] sm:$0xf]
        %v479 = vld [vmem:[#allocation6 + $0x70] sm:$0xf]
        %v480 = vld [vmem:[#allocation6 + $0x74] sm:$0xf]
        %v481 = vld [vmem:[#allocation6 + $0x78] sm:$0xf]
        %v482 = vld [vmem:[#allocation6 + $0x7c] sm:$0xf]
        %v483 = vld [vmem:[#allocation2] sm:$0xff]
        %v484 = vld [vmem:[#allocation2 + $0x8] sm:$0xff]
        %v485 = vld [vmem:[#allocation2 + $0x10] sm:$0xff]
        %v486 = vld [vmem:[#allocation2 + $0x18] sm:$0xff]
        %v487 = vld [vmem:[#allocation2 + $0x20] sm:$0xff]
        %v488 = vld [vmem:[#allocation2 + $0x28] sm:$0xff]
        %v489 = vld [vmem:[#allocation2 + $0x30] sm:$0xff]
        %v490 = vld [vmem:[#allocation2 + $0x38] sm:$0xff]
        %v491 = vld [vmem:[#allocation2 + $0x40] sm:$0xff]
        %v492 = vld [vmem:[#allocation2 + $0x48] sm:$0xff]
        %v493 = vld [vmem:[#allocation2 + $0x50] sm:$0xff]
        %v494 = vld [vmem:[#allocation2 + $0x58] sm:$0xff]
        %v495 = vld [vmem:[#allocation2 + $0x60] sm:$0xff]
        %v496 = vld [vmem:[#allocation2 + $0x68] sm:$0xff]
        %v497 = vld [vmem:[#allocation2 + $0x70] sm:$0xff]
        %v498 = vld [vmem:[#allocation2 + $0x78] sm:$0xff]
        %v531 = vunpack.c.l.b16 %v451
        %v532 = vunpack.c.l.b16 %v452
        %v533 = vunpack.c.l.b16 %v453
        %v534 = vunpack.c.l.b16 %v454
        %v535 = vunpack.c.l.b16 %v455
        %v536 = vunpack.c.l.b16 %v456
        %v537 = vunpack.c.l.b16 %v457
        %v538 = vunpack.c.l.b16 %v458
        %v539 = vunpack.c.l.b16 %v459
        %v540 = vunpack.c.l.b16 %v460
        %v541 = vunpack.c.l.b16 %v461
        %v542 = vunpack.c.l.b16 %v462
        %v543 = vunpack.c.l.b16 %v463
        %v544 = vunpack.c.l.b16 %v464
        %v545 = vunpack.c.l.b16 %v465
        %v546 = vunpack.c.l.b16 %v466
        %v547 = vunpack.c.l.b16 %v467
        %v548 = vunpack.c.l.b16 %v468
        %v549 = vunpack.c.l.b16 %v469
        %v550 = vunpack.c.l.b16 %v470
        %v551 = vunpack.c.l.b16 %v471
        %v552 = vunpack.c.l.b16 %v472
        %v553 = vunpack.c.l.b16 %v473
        %v554 = vunpack.c.l.b16 %v474
        %v555 = vunpack.c.l.b16 %v475
        %v556 = vunpack.c.l.b16 %v476
        %v557 = vunpack.c.l.b16 %v477
        %v558 = vunpack.c.l.b16 %v478
        %v559 = vunpack.c.l.b16 %v479
        %v560 = vunpack.c.l.b16 %v480
        %v561 = vunpack.c.l.b16 %v481
        %v562 = vunpack.c.l.b16 %v482
        %v563 = vpack.c.b16 %v532, %v531
        %v564 = vpack.c.b16 %v534, %v533
        %v565 = vpack.c.b16 %v536, %v535
        %v566 = vpack.c.b16 %v538, %v537
        %v567 = vpack.c.b16 %v540, %v539
        %v568 = vpack.c.b16 %v542, %v541
        %v569 = vpack.c.b16 %v544, %v543
        %v570 = vpack.c.b16 %v546, %v545
        %v571 = vpack.c.b16 %v548, %v547
        %v572 = vpack.c.b16 %v550, %v549
        %v573 = vpack.c.b16 %v552, %v551
        %v574 = vpack.c.b16 %v554, %v553
        %v575 = vpack.c.b16 %v556, %v555
        %v576 = vpack.c.b16 %v558, %v557
        %v577 = vpack.c.b16 %v560, %v559
        %v578 = vpack.c.b16 %v562, %v561
        %595 = vmatpush.bf16.msra.mxu0 %v570
        %596 = vmatpush.bf16.msra.mxu0 %v569
        %597 = vmatpush.bf16.msra.mxu0 %v568
        %598 = vmatpush.bf16.msra.mxu0 %v567
        %599 = vmatpush.bf16.msra.mxu0 %v566
        %600 = vmatpush.bf16.msra.mxu0 %v565
        %601 = vmatpush.bf16.msra.mxu0 %v564
        %602 = vmatpush.bf16.msra.mxu0 %v563
        %603 = vmatmul.bf16.gmra.mxu0 %v435
        %v604 = vpop.f32.mrf.mxu0
        %v605 = vadd.f32 0.0, %v604
        %v606 = vpop.f32.mrf.mxu0
        %v607 = vadd.f32 0.0, %v606
        %608 = vmatmul.bf16.gmra.mxu0 %v437
        %v609 = vpop.f32.mrf.mxu0
        %v610 = vadd.f32 0.0, %v609
        %v611 = vpop.f32.mrf.mxu0
        %v612 = vadd.f32 0.0, %v611
        %613 = vmatmul.bf16.gmra.mxu0 %v439
        %v614 = vpop.f32.mrf.mxu0
        %v615 = vadd.f32 0.0, %v614
        %v616 = vpop.f32.mrf.mxu0
        %v617 = vadd.f32 0.0, %v616
        %618 = vmatmul.bf16.gmra.mxu0 %v441
        %v619 = vpop.f32.mrf.mxu0
        %v620 = vadd.f32 0.0, %v619
        %v621 = vpop.f32.mrf.mxu0
        %v622 = vadd.f32 0.0, %v621
        %623 = vmatmul.bf16.gmra.mxu0 %v443
        %v624 = vpop.f32.mrf.mxu0
        %v625 = vadd.f32 0.0, %v624
        %v626 = vpop.f32.mrf.mxu0
        %v627 = vadd.f32 0.0, %v626
        %628 = vmatmul.bf16.gmra.mxu0 %v445
        %v629 = vpop.f32.mrf.mxu0
        %v630 = vadd.f32 0.0, %v629
        %v631 = vpop.f32.mrf.mxu0
        %v632 = vadd.f32 0.0, %v631
        %633 = vmatmul.bf16.gmra.mxu0 %v447
        %v634 = vpop.f32.mrf.mxu0
        %v635 = vadd.f32 0.0, %v634
        %v636 = vpop.f32.mrf.mxu0
        %v637 = vadd.f32 0.0, %v636
        %638 = vmatmul.bf16.gmra.mxu0 %v449
        %v639 = vpop.f32.mrf.mxu0
        %v640 = vadd.f32 0.0, %v639
        %v641 = vpop.f32.mrf.mxu0
        %v642 = vadd.f32 0.0, %v641
        %643 = vdwg.mxu0
        %644 = vmatpush.bf16.msra.mxu0 %v578
        %645 = vmatpush.bf16.msra.mxu0 %v577
        %646 = vmatpush.bf16.msra.mxu0 %v576
        %647 = vmatpush.bf16.msra.mxu0 %v575
        %648 = vmatpush.bf16.msra.mxu0 %v574
        %649 = vmatpush.bf16.msra.mxu0 %v573
        %650 = vmatpush.bf16.msra.mxu0 %v572
        %651 = vmatpush.bf16.msra.mxu0 %v571
        %652 = vmatmul.bf16.gmra.mxu0 %v436
        %v653 = vpop.f32.mrf.mxu0
        %v654 = vadd.f32 %v605, %v653
        %v655 = vpop.f32.mrf.mxu0
        %v656 = vadd.f32 %v607, %v655
        %657 = vmatmul.bf16.gmra.mxu0 %v438
        %v658 = vpop.f32.mrf.mxu0
        %v659 = vadd.f32 %v610, %v658
        %v660 = vpop.f32.mrf.mxu0
        %v661 = vadd.f32 %v612, %v660
        %662 = vmatmul.bf16.gmra.mxu0 %v440
        %v663 = vpop.f32.mrf.mxu0
        %v664 = vadd.f32 %v615, %v663
        %v665 = vpop.f32.mrf.mxu0
        %v666 = vadd.f32 %v617, %v665
        %667 = vmatmul.bf16.gmra.mxu0 %v442
        %v668 = vpop.f32.mrf.mxu0
        %v669 = vadd.f32 %v620, %v668
        %v670 = vpop.f32.mrf.mxu0
        %v671 = vadd.f32 %v622, %v670
        %672 = vmatmul.bf16.gmra.mxu0 %v444
        %v673 = vpop.f32.mrf.mxu0
        %v674 = vadd.f32 %v625, %v673
        %v675 = vpop.f32.mrf.mxu0
        %v676 = vadd.f32 %v627, %v675
        %677 = vmatmul.bf16.gmra.mxu0 %v446
        %v678 = vpop.f32.mrf.mxu0
        %v679 = vadd.f32 %v630, %v678
        %v680 = vpop.f32.mrf.mxu0
        %v681 = vadd.f32 %v632, %v680
        %682 = vmatmul.bf16.gmra.mxu0 %v448
        %v683 = vpop.f32.mrf.mxu0
        %v684 = vadd.f32 %v635, %v683
        %v685 = vpop.f32.mrf.mxu0
        %v686 = vadd.f32 %v637, %v685
        %687 = vmatmul.bf16.gmra.mxu0 %v450
        %v688 = vpop.f32.mrf.mxu0
        %v689 = vadd.f32 %v640, %v688
        %v690 = vpop.f32.mrf.mxu0
        %v691 = vadd.f32 %v642, %v690
        %692 = vdwg.mxu0
        %v693 = vadd.f32 %v483, %v654
        %v694 = vadd.f32 %v484, %v656
        %v695 = vadd.f32 %v485, %v659
        %v696 = vadd.f32 %v486, %v661
        %v697 = vadd.f32 %v487, %v664
        %v698 = vadd.f32 %v488, %v666
        %v699 = vadd.f32 %v489, %v669
        %v700 = vadd.f32 %v490, %v671
        %v701 = vadd.f32 %v491, %v674
        %v702 = vadd.f32 %v492, %v676
        %v703 = vadd.f32 %v493, %v679
        %v704 = vadd.f32 %v494, %v681
        %v705 = vadd.f32 %v495, %v684
        %v706 = vadd.f32 %v496, %v686
        %v707 = vadd.f32 %v497, %v689
        %v708 = vadd.f32 %v498, %v691
        %709 = vst [vmem:[#allocation2] sm:$0xff] %v693
        %710 = vst [vmem:[#allocation2 + $0x8] sm:$0xff] %v694
        %711 = vst [vmem:[#allocation2 + $0x10] sm:$0xff] %v695
        %712 = vst [vmem:[#allocation2 + $0x18] sm:$0xff] %v696
        %713 = vst [vmem:[#allocation2 + $0x20] sm:$0xff] %v697
        %714 = vst [vmem:[#allocation2 + $0x28] sm:$0xff] %v698
        %715 = vst [vmem:[#allocation2 + $0x30] sm:$0xff] %v699
        %716 = vst [vmem:[#allocation2 + $0x38] sm:$0xff] %v700
        %717 = vst [vmem:[#allocation2 + $0x40] sm:$0xff] %v701
        %718 = vst [vmem:[#allocation2 + $0x48] sm:$0xff] %v702
        %719 = vst [vmem:[#allocation2 + $0x50] sm:$0xff] %v703
        %720 = vst [vmem:[#allocation2 + $0x58] sm:$0xff] %v704
        %721 = vst [vmem:[#allocation2 + $0x60] sm:$0xff] %v705
        %722 = vst [vmem:[#allocation2 + $0x68] sm:$0xff] %v706
        %723 = vst [vmem:[#allocation2 + $0x70] sm:$0xff] %v707
        %724 = vst [vmem:[#allocation2 + $0x78] sm:$0xff] %v708
        // Predicated region
        $region69: #{tpu_custom_call.1} parent=43 // pred_check
          %p725 = pneg %p383
        $region70: #{tpu_custom_call.1} parent=43 // pred_check_branch
          %727 = sbr.rel (%p725) target = $region72
        $region71: #{tpu_custom_call.1} parent=43 // pred_region
          %v728 = vld [vmem:[#allocation2] sm:$0xff]
          %v729 = vld [vmem:[#allocation2 + $0x8] sm:$0xff]
          %v730 = vld [vmem:[#allocation2 + $0x10] sm:$0xff]
          %v731 = vld [vmem:[#allocation2 + $0x18] sm:$0xff]
          %v732 = vld [vmem:[#allocation2 + $0x20] sm:$0xff]
          %v733 = vld [vmem:[#allocation2 + $0x28] sm:$0xff]
          %v734 = vld [vmem:[#allocation2 + $0x30] sm:$0xff]
          %v735 = vld [vmem:[#allocation2 + $0x38] sm:$0xff]
          %v736 = vld [vmem:[#allocation2 + $0x40] sm:$0xff]
          %v737 = vld [vmem:[#allocation2 + $0x48] sm:$0xff]
          %v738 = vld [vmem:[#allocation2 + $0x50] sm:$0xff]
          %v739 = vld [vmem:[#allocation2 + $0x58] sm:$0xff]
          %v740 = vld [vmem:[#allocation2 + $0x60] sm:$0xff]
          %v741 = vld [vmem:[#allocation2 + $0x68] sm:$0xff]
          %v742 = vld [vmem:[#allocation2 + $0x70] sm:$0xff]
          %v743 = vld [vmem:[#allocation2 + $0x78] sm:$0xff]
          %v744 = vpack.c.bf16 %v729, %v728
          %v745 = vpack.c.bf16 %v731, %v730
          %v746 = vpack.c.bf16 %v733, %v732
          %v747 = vpack.c.bf16 %v735, %v734
          %v748 = vpack.c.bf16 %v737, %v736
          %v749 = vpack.c.bf16 %v739, %v738
          %v750 = vpack.c.bf16 %v741, %v740
          %v751 = vpack.c.bf16 %v743, %v742
          %v752 = vld [vmem:[#allocation9] sm:$0xf]
          %v753 = vld [vmem:[#allocation9 + $0x4] sm:$0xf]
          %v754 = vld [vmem:[#allocation9 + $0x8] sm:$0xf]
          %v755 = vld [vmem:[#allocation9 + $0xc] sm:$0xf]
          %v756 = vld [vmem:[#allocation9 + $0x10] sm:$0xf]
          %v757 = vld [vmem:[#allocation9 + $0x14] sm:$0xf]
          %v758 = vld [vmem:[#allocation9 + $0x18] sm:$0xf]
          %v759 = vld [vmem:[#allocation9 + $0x1c] sm:$0xf]
          %v760 = vld [vmem:[#allocation9 + $0x20] sm:$0xf]
          %v761 = vld [vmem:[#allocation9 + $0x24] sm:$0xf]
          %v762 = vld [vmem:[#allocation9 + $0x28] sm:$0xf]
          %v763 = vld [vmem:[#allocation9 + $0x2c] sm:$0xf]
          %v764 = vld [vmem:[#allocation9 + $0x30] sm:$0xf]
          %v765 = vld [vmem:[#allocation9 + $0x34] sm:$0xf]
          %v766 = vld [vmem:[#allocation9 + $0x38] sm:$0xf]
          %v767 = vld [vmem:[#allocation9 + $0x3c] sm:$0xf]
          %v768 = vld [vmem:[%s334] sm:$0xff]
          %v769 = vld [vmem:[%s334 + $0x8] sm:$0xff]
          %v770 = vld [vmem:[%s334 + $0x10] sm:$0xff]
          %v771 = vld [vmem:[%s334 + $0x18] sm:$0xff]
          %v772 = vld [vmem:[%s334 + $0x20] sm:$0xff]
          %v773 = vld [vmem:[%s334 + $0x28] sm:$0xff]
          %v774 = vld [vmem:[%s334 + $0x30] sm:$0xff]
          %v775 = vld [vmem:[%s334 + $0x38] sm:$0xff]
          %v776 = vld [vmem:[%s334 + $0x40] sm:$0xff]
          %v777 = vld [vmem:[%s334 + $0x48] sm:$0xff]
          %v778 = vld [vmem:[%s334 + $0x50] sm:$0xff]
          %v779 = vld [vmem:[%s334 + $0x58] sm:$0xff]
          %v780 = vld [vmem:[%s334 + $0x60] sm:$0xff]
          %v781 = vld [vmem:[%s334 + $0x68] sm:$0xff]
          %v782 = vld [vmem:[%s334 + $0x70] sm:$0xff]
          %v783 = vld [vmem:[%s334 + $0x78] sm:$0xff]
          %v784 = vld [vmem:[#allocation10] sm:$0xf]
          %v785 = vld [vmem:[#allocation10 + $0x4] sm:$0xf]
          %v786 = vld [vmem:[#allocation10 + $0x8] sm:$0xf]
          %v787 = vld [vmem:[#allocation10 + $0xc] sm:$0xf]
          %v788 = vld [vmem:[#allocation10 + $0x10] sm:$0xf]
          %v789 = vld [vmem:[#allocation10 + $0x14] sm:$0xf]
          %v790 = vld [vmem:[#allocation10 + $0x18] sm:$0xf]
          %v791 = vld [vmem:[#allocation10 + $0x1c] sm:$0xf]
          %v792 = vld [vmem:[#allocation10 + $0x20] sm:$0xf]
          %v793 = vld [vmem:[#allocation10 + $0x24] sm:$0xf]
          %v794 = vld [vmem:[#allocation10 + $0x28] sm:$0xf]
          %v795 = vld [vmem:[#allocation10 + $0x2c] sm:$0xf]
          %v796 = vld [vmem:[#allocation10 + $0x30] sm:$0xf]
          %v797 = vld [vmem:[#allocation10 + $0x34] sm:$0xf]
          %v798 = vld [vmem:[#allocation10 + $0x38] sm:$0xf]
          %v799 = vld [vmem:[#allocation10 + $0x3c] sm:$0xf]
          %v800 = vld [vmem:[#allocation10 + $0x40] sm:$0xf]
          %v801 = vld [vmem:[#allocation10 + $0x44] sm:$0xf]
          %v802 = vld [vmem:[#allocation10 + $0x48] sm:$0xf]
          %v803 = vld [vmem:[#allocation10 + $0x4c] sm:$0xf]
          %v804 = vld [vmem:[#allocation10 + $0x50] sm:$0xf]
          %v805 = vld [vmem:[#allocation10 + $0x54] sm:$0xf]
          %v806 = vld [vmem:[#allocation10 + $0x58] sm:$0xf]
          %v807 = vld [vmem:[#allocation10 + $0x5c] sm:$0xf]
          %v808 = vld [vmem:[#allocation10 + $0x60] sm:$0xf]
          %v809 = vld [vmem:[#allocation10 + $0x64] sm:$0xf]
          %v810 = vld [vmem:[#allocation10 + $0x68] sm:$0xf]
          %v811 = vld [vmem:[#allocation10 + $0x6c] sm:$0xf]
          %v812 = vld [vmem:[#allocation10 + $0x70] sm:$0xf]
          %v813 = vld [vmem:[#allocation10 + $0x74] sm:$0xf]
          %v814 = vld [vmem:[#allocation10 + $0x78] sm:$0xf]
          %v815 = vld [vmem:[#allocation10 + $0x7c] sm:$0xf]
          %v832 = vunpack.c.l.b16 %v768
          %v833 = vunpack.c.h.b16 %v768
          %v834 = vunpack.c.l.b16 %v769
          %v835 = vunpack.c.h.b16 %v769
          %v836 = vunpack.c.l.b16 %v770
          %v837 = vunpack.c.h.b16 %v770
          %v838 = vunpack.c.l.b16 %v771
          %v839 = vunpack.c.h.b16 %v771
          %v840 = vunpack.c.l.b16 %v772
          %v841 = vunpack.c.h.b16 %v772
          %v842 = vunpack.c.l.b16 %v773
          %v843 = vunpack.c.h.b16 %v773
          %v844 = vunpack.c.l.b16 %v774
          %v845 = vunpack.c.h.b16 %v774
          %v846 = vunpack.c.l.b16 %v775
          %v847 = vunpack.c.h.b16 %v775
          %v848 = vunpack.c.l.b16 %v776
          %v849 = vunpack.c.h.b16 %v776
          %v850 = vunpack.c.l.b16 %v777
          %v851 = vunpack.c.h.b16 %v777
          %v852 = vunpack.c.l.b16 %v778
          %v853 = vunpack.c.h.b16 %v778
          %v854 = vunpack.c.l.b16 %v779
          %v855 = vunpack.c.h.b16 %v779
          %v856 = vunpack.c.l.b16 %v780
          %v857 = vunpack.c.h.b16 %v780
          %v858 = vunpack.c.l.b16 %v781
          %v859 = vunpack.c.h.b16 %v781
          %v860 = vunpack.c.l.b16 %v782
          %v861 = vunpack.c.h.b16 %v782
          %v862 = vunpack.c.l.b16 %v783
          %v863 = vunpack.c.h.b16 %v783
          %v864 = vpack.c.b16 %v834, %v832
          %v865 = vpack.c.b16 %v835, %v833
          %v866 = vpack.c.b16 %v838, %v836
          %v867 = vpack.c.b16 %v839, %v837
          %v868 = vpack.c.b16 %v842, %v840
          %v869 = vpack.c.b16 %v843, %v841
          %v870 = vpack.c.b16 %v846, %v844
          %v871 = vpack.c.b16 %v847, %v845
          %v872 = vpack.c.b16 %v850, %v848
          %v873 = vpack.c.b16 %v851, %v849
          %v874 = vpack.c.b16 %v854, %v852
          %v875 = vpack.c.b16 %v855, %v853
          %v876 = vpack.c.b16 %v858, %v856
          %v877 = vpack.c.b16 %v859, %v857
          %v878 = vpack.c.b16 %v862, %v860
          %v879 = vpack.c.b16 %v863, %v861
          %v928 = vunpack.c.l.b16 %v784
          %v929 = vunpack.c.l.b16 %v785
          %v930 = vunpack.c.l.b16 %v786
          %v931 = vunpack.c.l.b16 %v787
          %v932 = vunpack.c.l.b16 %v788
          %v933 = vunpack.c.l.b16 %v789
          %v934 = vunpack.c.l.b16 %v790
          %v935 = vunpack.c.l.b16 %v791
          %v936 = vunpack.c.l.b16 %v792
          %v937 = vunpack.c.l.b16 %v793
          %v938 = vunpack.c.l.b16 %v794
          %v939 = vunpack.c.l.b16 %v795
          %v940 = vunpack.c.l.b16 %v796
          %v941 = vunpack.c.l.b16 %v797
          %v942 = vunpack.c.l.b16 %v798
          %v943 = vunpack.c.l.b16 %v799
          %v944 = vunpack.c.l.b16 %v800
          %v945 = vunpack.c.l.b16 %v801
          %v946 = vunpack.c.l.b16 %v802
          %v947 = vunpack.c.l.b16 %v803
          %v948 = vunpack.c.l.b16 %v804
          %v949 = vunpack.c.l.b16 %v805
          %v950 = vunpack.c.l.b16 %v806
          %v951 = vunpack.c.l.b16 %v807
          %v952 = vunpack.c.l.b16 %v808
          %v953 = vunpack.c.l.b16 %v809
          %v954 = vunpack.c.l.b16 %v810
          %v955 = vunpack.c.l.b16 %v811
          %v956 = vunpack.c.l.b16 %v812
          %v957 = vunpack.c.l.b16 %v813
          %v958 = vunpack.c.l.b16 %v814
          %v959 = vunpack.c.l.b16 %v815
          %v960 = vpack.c.b16 %v929, %v928
          %v961 = vpack.c.b16 %v931, %v930
          %v962 = vpack.c.b16 %v933, %v932
          %v963 = vpack.c.b16 %v935, %v934
          %v964 = vpack.c.b16 %v937, %v936
          %v965 = vpack.c.b16 %v939, %v938
          %v966 = vpack.c.b16 %v941, %v940
          %v967 = vpack.c.b16 %v943, %v942
          %v968 = vpack.c.b16 %v945, %v944
          %v969 = vpack.c.b16 %v947, %v946
          %v970 = vpack.c.b16 %v949, %v948
          %v971 = vpack.c.b16 %v951, %v950
          %v972 = vpack.c.b16 %v953, %v952
          %v973 = vpack.c.b16 %v955, %v954
          %v974 = vpack.c.b16 %v957, %v956
          %v975 = vpack.c.b16 %v959, %v958
          %992 = vmatpush.bf16.msra.mxu0 %v967
          %993 = vmatpush.bf16.msra.mxu0 %v966
          %994 = vmatpush.bf16.msra.mxu0 %v965
          %995 = vmatpush.bf16.msra.mxu0 %v964
          %996 = vmatpush.bf16.msra.mxu0 %v963
          %997 = vmatpush.bf16.msra.mxu0 %v962
          %998 = vmatpush.bf16.msra.mxu0 %v961
          %999 = vmatpush.bf16.msra.mxu0 %v960
          %1000 = vmatmul.bf16.gmra.mxu0 %v864
          %v1001 = vpop.f32.mrf.mxu0
          %v1002 = vadd.f32 0.0, %v1001
          %v1003 = vpop.f32.mrf.mxu0
          %v1004 = vadd.f32 0.0, %v1003
          %1005 = vmatmul.bf16.gmra.mxu0 %v866
          %v1006 = vpop.f32.mrf.mxu0
          %v1007 = vadd.f32 0.0, %v1006
          %v1008 = vpop.f32.mrf.mxu0
          %v1009 = vadd.f32 0.0, %v1008
          %1010 = vmatmul.bf16.gmra.mxu0 %v868
          %v1011 = vpop.f32.mrf.mxu0
          %v1012 = vadd.f32 0.0, %v1011
          %v1013 = vpop.f32.mrf.mxu0
          %v1014 = vadd.f32 0.0, %v1013
          %1015 = vmatmul.bf16.gmra.mxu0 %v870
          %v1016 = vpop.f32.mrf.mxu0
          %v1017 = vadd.f32 0.0, %v1016
          %v1018 = vpop.f32.mrf.mxu0
          %v1019 = vadd.f32 0.0, %v1018
          %1020 = vmatmul.bf16.gmra.mxu0 %v872
          %v1021 = vpop.f32.mrf.mxu0
          %v1022 = vadd.f32 0.0, %v1021
          %v1023 = vpop.f32.mrf.mxu0
          %v1024 = vadd.f32 0.0, %v1023
          %1025 = vmatmul.bf16.gmra.mxu0 %v874
          %v1026 = vpop.f32.mrf.mxu0
          %v1027 = vadd.f32 0.0, %v1026
          %v1028 = vpop.f32.mrf.mxu0
          %v1029 = vadd.f32 0.0, %v1028
          %1030 = vmatmul.bf16.gmra.mxu0 %v876
          %v1031 = vpop.f32.mrf.mxu0
          %v1032 = vadd.f32 0.0, %v1031
          %v1033 = vpop.f32.mrf.mxu0
          %v1034 = vadd.f32 0.0, %v1033
          %1035 = vmatmul.bf16.gmra.mxu0 %v878
          %v1036 = vpop.f32.mrf.mxu0
          %v1037 = vadd.f32 0.0, %v1036
          %v1038 = vpop.f32.mrf.mxu0
          %v1039 = vadd.f32 0.0, %v1038
          %1040 = vdwg.mxu0
          %1041 = vmatpush.bf16.msra.mxu0 %v975
          %1042 = vmatpush.bf16.msra.mxu0 %v974
          %1043 = vmatpush.bf16.msra.mxu0 %v973
          %1044 = vmatpush.bf16.msra.mxu0 %v972
          %1045 = vmatpush.bf16.msra.mxu0 %v971
          %1046 = vmatpush.bf16.msra.mxu0 %v970
          %1047 = vmatpush.bf16.msra.mxu0 %v969
          %1048 = vmatpush.bf16.msra.mxu0 %v968
          %1049 = vmatmul.bf16.gmra.mxu0 %v865
          %v1050 = vpop.f32.mrf.mxu0
          %v1051 = vadd.f32 %v1002, %v1050
          %v1052 = vpop.f32.mrf.mxu0
          %v1053 = vadd.f32 %v1004, %v1052
          %1054 = vmatmul.bf16.gmra.mxu0 %v867
          %v1055 = vpop.f32.mrf.mxu0
          %v1056 = vadd.f32 %v1007, %v1055
          %v1057 = vpop.f32.mrf.mxu0
          %v1058 = vadd.f32 %v1009, %v1057
          %1059 = vmatmul.bf16.gmra.mxu0 %v869
          %v1060 = vpop.f32.mrf.mxu0
          %v1061 = vadd.f32 %v1012, %v1060
          %v1062 = vpop.f32.mrf.mxu0
          %v1063 = vadd.f32 %v1014, %v1062
          %1064 = vmatmul.bf16.gmra.mxu0 %v871
          %v1065 = vpop.f32.mrf.mxu0
          %v1066 = vadd.f32 %v1017, %v1065
          %v1067 = vpop.f32.mrf.mxu0
          %v1068 = vadd.f32 %v1019, %v1067
          %1069 = vmatmul.bf16.gmra.mxu0 %v873
          %v1070 = vpop.f32.mrf.mxu0
          %v1071 = vadd.f32 %v1022, %v1070
          %v1072 = vpop.f32.mrf.mxu0
          %v1073 = vadd.f32 %v1024, %v1072
          %1074 = vmatmul.bf16.gmra.mxu0 %v875
          %v1075 = vpop.f32.mrf.mxu0
          %v1076 = vadd.f32 %v1027, %v1075
          %v1077 = vpop.f32.mrf.mxu0
          %v1078 = vadd.f32 %v1029, %v1077
          %1079 = vmatmul.bf16.gmra.mxu0 %v877
          %v1080 = vpop.f32.mrf.mxu0
          %v1081 = vadd.f32 %v1032, %v1080
          %v1082 = vpop.f32.mrf.mxu0
          %v1083 = vadd.f32 %v1034, %v1082
          %1084 = vmatmul.bf16.gmra.mxu0 %v879
          %v1085 = vpop.f32.mrf.mxu0
          %v1086 = vadd.f32 %v1037, %v1085
          %v1087 = vpop.f32.mrf.mxu0
          %v1088 = vadd.f32 %v1039, %v1087
          %1089 = vdwg.mxu0
          %v1106 = vunpack.c.l.b16 %v752
          %v1107 = vunpack.c.l.b16 %v753
          %v1108 = vunpack.c.l.b16 %v754
          %v1109 = vunpack.c.l.b16 %v755
          %v1110 = vunpack.c.l.b16 %v756
          %v1111 = vunpack.c.l.b16 %v757
          %v1112 = vunpack.c.l.b16 %v758
          %v1113 = vunpack.c.l.b16 %v759
          %v1114 = vunpack.c.l.b16 %v760
          %v1115 = vunpack.c.l.b16 %v761
          %v1116 = vunpack.c.l.b16 %v762
          %v1117 = vunpack.c.l.b16 %v763
          %v1118 = vunpack.c.l.b16 %v764
          %v1119 = vunpack.c.l.b16 %v765
          %v1120 = vunpack.c.l.b16 %v766
          %v1121 = vunpack.c.l.b16 %v767
          %v1122 = vpack.c.b16 %v1107, %v1106
          %v1123 = vpack.c.b16 %v1109, %v1108
          %v1124 = vpack.c.b16 %v1111, %v1110
          %v1125 = vpack.c.b16 %v1113, %v1112
          %v1126 = vpack.c.b16 %v1115, %v1114
          %v1127 = vpack.c.b16 %v1117, %v1116
          %v1128 = vpack.c.b16 %v1119, %v1118
          %v1129 = vpack.c.b16 %v1121, %v1120
          %1138 = vmatpush.bf16.msra.mxu0 %v1129
          %1139 = vmatpush.bf16.msra.mxu0 %v1128
          %1140 = vmatpush.bf16.msra.mxu0 %v1127
          %1141 = vmatpush.bf16.msra.mxu0 %v1126
          %1142 = vmatpush.bf16.msra.mxu0 %v1125
          %1143 = vmatpush.bf16.msra.mxu0 %v1124
          %1144 = vmatpush.bf16.msra.mxu0 %v1123
          %1145 = vmatpush.bf16.msra.mxu0 %v1122
          %1146 = vmatmul.bf16.gmra.mxu0 %v744
          %v1147 = vpop.f32.mrf.mxu0
          %v1148 = vadd.f32 %v1051, %v1147
          %v1149 = vpop.f32.mrf.mxu0
          %v1150 = vadd.f32 %v1053, %v1149
          %1151 = vmatmul.bf16.gmra.mxu0 %v745
          %v1152 = vpop.f32.mrf.mxu0
          %v1153 = vadd.f32 %v1056, %v1152
          %v1154 = vpop.f32.mrf.mxu0
          %v1155 = vadd.f32 %v1058, %v1154
          %1156 = vmatmul.bf16.gmra.mxu0 %v746
          %v1157 = vpop.f32.mrf.mxu0
          %v1158 = vadd.f32 %v1061, %v1157
          %v1159 = vpop.f32.mrf.mxu0
          %v1160 = vadd.f32 %v1063, %v1159
          %1161 = vmatmul.bf16.gmra.mxu0 %v747
          %v1162 = vpop.f32.mrf.mxu0
          %v1163 = vadd.f32 %v1066, %v1162
          %v1164 = vpop.f32.mrf.mxu0
          %v1165 = vadd.f32 %v1068, %v1164
          %1166 = vmatmul.bf16.gmra.mxu0 %v748
          %v1167 = vpop.f32.mrf.mxu0
          %v1168 = vadd.f32 %v1071, %v1167
          %v1169 = vpop.f32.mrf.mxu0
          %v1170 = vadd.f32 %v1073, %v1169
          %1171 = vmatmul.bf16.gmra.mxu0 %v749
          %v1172 = vpop.f32.mrf.mxu0
          %v1173 = vadd.f32 %v1076, %v1172
          %v1174 = vpop.f32.mrf.mxu0
          %v1175 = vadd.f32 %v1078, %v1174
          %1176 = vmatmul.bf16.gmra.mxu0 %v750
          %v1177 = vpop.f32.mrf.mxu0
          %v1178 = vadd.f32 %v1081, %v1177
          %v1179 = vpop.f32.mrf.mxu0
          %v1180 = vadd.f32 %v1083, %v1179
          %1181 = vmatmul.bf16.gmra.mxu0 %v751
          %v1182 = vpop.f32.mrf.mxu0
          %v1183 = vadd.f32 %v1086, %v1182
          %v1184 = vpop.f32.mrf.mxu0
          %v1185 = vadd.f32 %v1088, %v1184
          %1186 = vdwg.mxu0
          %v1187 = vld [vmem:[%s5] sm:$0x1]
          %v1189 = vperm.slane %v1187, 0
          %v1191 = vadd.f32 %v1148, %v1189
          %v1192 = vadd.f32 %v1150, %v1189
          %v1193 = vadd.f32 %v1153, %v1189
          %v1194 = vadd.f32 %v1155, %v1189
          %v1195 = vadd.f32 %v1158, %v1189
          %v1196 = vadd.f32 %v1160, %v1189
          %v1197 = vadd.f32 %v1163, %v1189
          %v1198 = vadd.f32 %v1165, %v1189
          %v1199 = vadd.f32 %v1168, %v1189
          %v1200 = vadd.f32 %v1170, %v1189
          %v1201 = vadd.f32 %v1173, %v1189
          %v1202 = vadd.f32 %v1175, %v1189
          %v1203 = vadd.f32 %v1178, %v1189
          %v1204 = vadd.f32 %v1180, %v1189
          %v1205 = vadd.f32 %v1183, %v1189
          %v1206 = vadd.f32 %v1185, %v1189
          %v1207 = vmax.f32 %v1191, 0.0
          %v1208 = vmax.f32 %v1192, 0.0
          %v1209 = vmax.f32 %v1193, 0.0
          %v1210 = vmax.f32 %v1194, 0.0
          %v1211 = vmax.f32 %v1195, 0.0
          %v1212 = vmax.f32 %v1196, 0.0
          %v1213 = vmax.f32 %v1197, 0.0
          %v1214 = vmax.f32 %v1198, 0.0
          %v1215 = vmax.f32 %v1199, 0.0
          %v1216 = vmax.f32 %v1200, 0.0
          %v1217 = vmax.f32 %v1201, 0.0
          %v1218 = vmax.f32 %v1202, 0.0
          %v1219 = vmax.f32 %v1203, 0.0
          %v1220 = vmax.f32 %v1204, 0.0
          %v1221 = vmax.f32 %v1205, 0.0
          %v1222 = vmax.f32 %v1206, 0.0
          %1223 = vst [vmem:[%s378] sm:$0xff] %v1207
          %1224 = vst [vmem:[%s378 + $0x8] sm:$0xff] %v1208
          %1225 = vst [vmem:[%s378 + $0x10] sm:$0xff] %v1209
          %1226 = vst [vmem:[%s378 + $0x18] sm:$0xff] %v1210
          %1227 = vst [vmem:[%s378 + $0x20] sm:$0xff] %v1211
          %1228 = vst [vmem:[%s378 + $0x28] sm:$0xff] %v1212
          %1229 = vst [vmem:[%s378 + $0x30] sm:$0xff] %v1213
          %1230 = vst [vmem:[%s378 + $0x38] sm:$0xff] %v1214
          %1231 = vst [vmem:[%s378 + $0x40] sm:$0xff] %v1215
          %1232 = vst [vmem:[%s378 + $0x48] sm:$0xff] %v1216
          %1233 = vst [vmem:[%s378 + $0x50] sm:$0xff] %v1217
          %1234 = vst [vmem:[%s378 + $0x58] sm:$0xff] %v1218
          %1235 = vst [vmem:[%s378 + $0x60] sm:$0xff] %v1219
          %1236 = vst [vmem:[%s378 + $0x68] sm:$0xff] %v1220
          %1237 = vst [vmem:[%s378 + $0x70] sm:$0xff] %v1221
          %1238 = vst [vmem:[%s378 + $0x78] sm:$0xff] %v1222
        $region72: #{tpu_custom_call.1} parent=43 // pred_fallthru
          _
        %s1239 = sand.u32 %s183, 1
        %s1240 = scalar_lea.sflag [#allocation5], %s1239
        %s1241 = sand.u32 %s183, 1
        %s1242 = smul.addr %s1241, 128
        %s1243 = scalar_lea.vmem [#allocation12], %s1242
        // Predicated region
        $region73: #{tpu_custom_call.1} parent=43 // pred_check
          %p1244 = pneg %p193
        $region74: #{tpu_custom_call.1} parent=43 // pred_check_branch
          %1246 = sbr.rel (%p1244) target = $region76
        $region75: #{tpu_custom_call.1} parent=43 // pred_region
          %s1247 = smul.u32 16, %s29
          %1249 = vsyncadd %s1240, 0
          %s1250 = smul.addr %s1247, 8
          %s1251 = scalar_lea.hbm %s6, %s1250
          %s1252 = sshll.u32 %s1243, 4
          %s1253 = int_to_ptr.vmem [resolvable:$true] %s1252
          %s1254 = sshll.u32 %s1251, 4
          %s1255 = int_to_ptr.hbm [resolvable:$true] %s1254
          %1260 = dma.vmem_to_hbm [thread:$0]  %s1253, 2048, %s1255, %s1240, 128, 128, 8
        $region76: #{tpu_custom_call.1} parent=43 // pred_fallthru
          _
      $region44: #{tpu_custom_call.1} parent=5 // pred_fallthru
        _
      %p1261 = scmp.le.s32.totalorder 2, %s20
      // Predicated region
      $region77: #{tpu_custom_call.1} parent=5 // pred_check
        %p1262 = pneg %p1261
      $region78: #{tpu_custom_call.1} parent=5 // pred_check_branch
        %1264 = sbr.rel (%p1262) target = $region80
      $region79: #{tpu_custom_call.1} parent=5 // pred_region
        %s1265 = ssub.s32 %s20, 2
        // Predicated region
        $region81: #{tpu_custom_call.1} parent=79 // pred_check
          %p1266 = pneg %p199
        $region82: #{tpu_custom_call.1} parent=79 // pred_check_branch
          %1268 = sbr.rel (%p1266) target = $region84
        $region83: #{tpu_custom_call.1} parent=79 // pred_region
          %s1269 = sand.u32 %s184, 1
          %s1270 = scalar_lea.sflag [#allocation5], %s1269
          %s1271 = sand.u32 %s184, 1
          %s1272 = smul.addr %s1271, 128
          %s1273 = scalar_lea.vmem [#allocation12], %s1272
          %1275 = dma.done %s1270, 2048
        $region84: #{tpu_custom_call.1} parent=79 // pred_fallthru
          _
      $region80: #{tpu_custom_call.1} parent=5 // pred_fallthru
        _
    $region6: #{tpu_custom_call.1} parent=1 // loop_footer
      %s24 = sadd.s32 1, %s20
    $region7: #{tpu_custom_call.1} parent=1 // loop_footer_branch
      %19 = sbr.rel target = $region3
    $region8: #{tpu_custom_call.1} parent=1 // loop_exit
      _
    %1276 = vsyncpa [#allocation4], 1
    %s1277 = scalar_lea.sflag [#allocation4], 1
    %1278 = vsyncpa %s1277, 1
    %1279 = vsyncpa [#allocation7], 1
    %1280 = vsyncpa [#allocation11], 1
    %1281 = vsyncpa [#allocation5], 1
    %s1282 = scalar_lea.sflag [#allocation5], 1
    %1283 = vsyncpa %s1282, 1

</llo_original>
